<compile_context>
chip_gen: v6e
topology: v6e:2x2x1
jax: 0.10.0
libtpu: 0.0.40
codegen_flags: <defaults>
</compile_context>

<pallas_src>
import functools

import jax
import jax.numpy as jnp
from jax import lax
from jax.experimental import pallas as pl
from jax.experimental.pallas import tpu as pltpu


# ---------------------------------------------------------------------------
# Kernels
# ---------------------------------------------------------------------------
def _eye2d(C):
    row = lax.broadcasted_iota(jnp.int32, (C, C), 0)
    col = lax.broadcasted_iota(jnp.int32, (C, C), 1)
    return (row == col).astype(jnp.float32)  # (C, C), broadcast at the add


def _signal2spd_kernel_full(x_ref, o_ref):
    """Whole time axis in one block: centered Gram matrix, normalized by trace."""
    _, C, _ = o_ref.shape
    x = x_ref[...].astype(jnp.float32)                   # cast in-kernel (bf16 DMA)

    mean = jnp.mean(x, axis=-1, keepdims=True)           # (Bb, C, 1)
    xc = x - mean                                        # (Bb, C, T)

    # Un-normalized covariance (Gram) on the MXU; 1/(T-1) cancels with trace.
    cov = jnp.einsum("bct,bdt->bcd", xc, xc,
                     preferred_element_type=jnp.float32)  # (Bb, C, C)

    # trace(xc @ xc^T) == sum(xc**2); VPU/XLU work overlapping the matmul.
    sq = xc * xc
    tra = jnp.sum(sq, axis=-1, keepdims=True)            # (Bb, C, 1)
    tra = jnp.sum(tra, axis=-2, keepdims=True)           # (Bb, 1, 1)
    inv = pl.reciprocal(tra, approx=False)               # exact: keep 1e-5 tol

    eye = _eye2d(C)                                      # (C, C) once, broadcast
    o_ref[...] = (cov * inv + 1e-5 * eye[None]).astype(o_ref.dtype)


def _signal2spd_kernel_tiled(x_ref, o_ref, sumx_ref, *, total_t):
    """T-tiled accumulation (P3): o_ref accumulates sum_xxT across the
    "arbitrary" T axis, sumx_ref accumulates sum_x; centering folded at the end
    as cov = sum_xxT - sum_x @ (sum_x / T)^T."""
    t = pl.program_id(1)
    _, C, _ = o_ref.shape
    x = x_ref[...].astype(jnp.float32)                   # (Bb, C, Tb)

    @pl.when(t == 0)
    def _():
        o_ref[...] = jnp.zeros_like(o_ref)
        sumx_ref[...] = jnp.zeros_like(sumx_ref)

    sumx_ref[...] += jnp.sum(x, axis=-1, keepdims=True)  # (Bb, C, 1)
    o_ref[...] += jnp.einsum("bct,bdt->bcd", x, x,
                             preferred_element_type=jnp.float32)

    @pl.when(t == pl.num_programs(1) - 1)
    def _():
        sx = sumx_ref[...]                               # (Bb, C, 1)
        mean = sx * (1.0 / total_t)                      # (Bb, C, 1)
        cov = o_ref[...] - jnp.einsum("bci,bdi->bcd", sx, mean,
                                      preferred_element_type=jnp.float32)
        eye = _eye2d(C)
        tra = jnp.sum(cov * eye[None], axis=-1, keepdims=True)
        tra = jnp.sum(tra, axis=-2, keepdims=True)       # (Bb, 1, 1)
        inv = pl.reciprocal(tra, approx=False)
        o_ref[...] = (cov * inv + 1e-5 * eye[None]).astype(o_ref.dtype)


# ---------------------------------------------------------------------------
# VMEM sizing (generation-aware, (8,128)-padded)
# ---------------------------------------------------------------------------
def _round_up(v, m):
    return (v + m - 1) // m * m


def _padded_bytes(sublanes, lanes, itemsize):
    return _round_up(max(sublanes, 1), 8) * _round_up(max(lanes, 1), 128) * itemsize


def _vmem_capacity_bytes():
    try:
        info = pltpu.get_tpu_info()
        cap = getattr(info, "vmem_capacity_bytes", None)
        if cap:
            return int(cap)
    except Exception:
        pass
    return 64 * 1024 * 1024  # conservative fallback (v7x per-core)


def _generation_config():
    cap = _vmem_capacity_bytes()
    if cap <= 80 * 1024 * 1024:
        # v7x-class: 64 MiB VMEM per TensorCore, 2 TCs/chip -> keep >= 2 steps
        # per core so input DMA / output writeback still overlap compute.
        return dict(budget=24 * 1024 * 1024, limit=32 * 1024 * 1024,
                    min_batch_steps=4)
    # v5e / v6e: 128 MiB VMEM, single TensorCore -> bigger tiles, fewer steps.
    return dict(budget=56 * 1024 * 1024, limit=96 * 1024 * 1024,
                min_batch_steps=2)


def _full_bytes_per_batch(C, T, in_itemsize, in_buffers):
    in_blk = _padded_bytes(C, T, in_itemsize)     # DMA window (native dtype)
    in_f32 = _padded_bytes(C, T, 4)               # f32 x / xc / xc*xc temps
    out_blk = _padded_bytes(C, C, 4)
    return in_buffers * in_blk + 2 * out_blk + 3 * in_f32 + out_blk


def _tiled_bytes_per_batch(C, Tb, in_itemsize, in_buffers):
    in_blk = _padded_bytes(C, Tb, in_itemsize)
    in_f32 = _padded_bytes(C, Tb, 4)
    out_blk = _padded_bytes(C, C, 4)              # accumulator lives in o_ref
    sumx = _padded_bytes(C, 1, 4)
    return in_buffers * in_blk + 2 * out_blk + 2 * in_f32 + out_blk + sumx


def _largest_divisor_at_most(n, cap):
    cap = max(1, min(cap, n))
    for d in range(cap, 0, -1):
        if n % d == 0:
            return d
    return 1


# ---------------------------------------------------------------------------
# Wrapper
# ---------------------------------------------------------------------------
def signal2spd(x, *, t_block=None, input_buffer_count=2):
    """Pallas TPU forward pass of the signal2spd module.

    Args:
      x: (B, C, T, 1) or (B, C, T) array (kept in its native float dtype).
      t_block: optional T tile (multiple of 128 dividing T) forcing the
        T-accumulation path; by default it is enabled only when the full-T
        block does not fit the per-generation VMEM budget.
      input_buffer_count: input pipeline depth (2 = default double buffering).
    Returns:
      (B, C, C) float32 SPD matrices: cov/trace(cov) + 1e-5*I.
    """
    # Mirror torch's x.squeeze() without eating B=1 / C=1 dimensions.
    if x.ndim == 4 and x.shape[-1] == 1:
        x = x[..., 0]
    assert x.ndim == 3, f"expected (B, C, T)[, 1], got shape {x.shape}"
    B, C, T = x.shape
    if not jnp.issubdtype(x.dtype, jnp.floating):
        x = x.astype(jnp.float32)  # ints -> f32; floats stay native (cast in-kernel)
    itemsize = jnp.dtype(x.dtype).itemsize

    cfg = _generation_config()
    budget, limit, min_steps = cfg["budget"], cfg["limit"], cfg["min_batch_steps"]

    # --- choose path: full-T block vs. T-accumulation grid axis -------------
    full_pb = _full_bytes_per_batch(C, T, itemsize, input_buffer_count)
    use_tiled, tb = False, T
    if t_block is not None and t_block < T:
        assert T % t_block == 0 and t_block % 128 == 0, \
            "t_block must be a multiple of 128 that divides T"
        use_tiled, tb = True, t_block
    elif t_block is None and full_pb > budget and T % 128 == 0:
        k = T // 128
        while k >= 1:
            cand = 128 * k
            if T % cand == 0 and \
               _tiled_bytes_per_batch(C, cand, itemsize, input_buffer_count) <= budget:
                use_tiled, tb = True, cand
                break
            k -= 1
    # TODO(synk): ragged T (not a multiple of 128) that does not fit VMEM still
    # falls back to the full-T path; add masked T-accumulation for that case.

    per_batch = (_tiled_bytes_per_batch(C, tb, itemsize, input_buffer_count)
                 if use_tiled else full_pb)
    if per_batch > budget:
        # Best effort: single-batch tiles, let the compiler use the full VMEM.
        limit = max(limit, min(_vmem_capacity_bytes(), per_batch + (4 << 20)))

    cap = max(1, budget // per_batch)
    if B >= min_steps:
        cap = min(cap, max(1, B // min_steps))
    Bb = _largest_divisor_at_most(B, cap)

    in_spec_kwargs = {}
    if input_buffer_count != 2:
        in_spec_kwargs["pipeline_mode"] = pl.Buffered(input_buffer_count)

    out_shape = jax.ShapeDtypeStruct((B, C, C), jnp.float32)

    if not use_tiled:
        return pl.pallas_call(
            _signal2spd_kernel_full,
            out_shape=out_shape,
            grid_spec=pltpu.PrefetchScalarGridSpec(
                num_scalar_prefetch=0,
                grid=(B // Bb,),
                in_specs=[pl.BlockSpec((Bb, C, T), lambda b: (b, 0, 0),
                                       **in_spec_kwargs)],
                out_specs=pl.BlockSpec((Bb, C, C), lambda b: (b, 0, 0)),
            ),
            compiler_params=pltpu.CompilerParams(
                dimension_semantics=("parallel",),
                vmem_limit_bytes=limit,
            ),
        )(x)

    nt = T // tb
    kernel = functools.partial(_signal2spd_kernel_tiled, total_t=T)
    return pl.pallas_call(
        kernel,
        out_shape=out_shape,
        grid_spec=pltpu.PrefetchScalarGridSpec(
            num_scalar_prefetch=0,
            grid=(B // Bb, nt),
            in_specs=[pl.BlockSpec((Bb, C, tb), lambda b, t: (b, 0, t),
                                   **in_spec_kwargs)],
            out_specs=pl.BlockSpec((Bb, C, C), lambda b, t: (b, 0, 0)),
            scratch_shapes=[pltpu.VMEM((Bb, C, 1), jnp.float32)],
        ),
        compiler_params=pltpu.CompilerParams(
            dimension_semantics=("parallel", "arbitrary"),
            vmem_limit_bytes=limit,
        ),
    )(x)


# ---------------------------------------------------------------------------
# Pure-JAX reference (mirrors the PyTorch module exactly)
# ---------------------------------------------------------------------------
def _reference(x):
    if x.ndim == 4 and x.shape[-1] == 1:
        x = x[..., 0]
    x = x.astype(jnp.float32)
    mean = jnp.mean(x, axis=-1, keepdims=True)
    xc = x - mean
    cov = jnp.einsum("bct,bdt->bcd", xc, xc,
                     preferred_element_type=jnp.float32) / (x.shape[-1] - 1)
    tra = jnp.trace(cov, axis1=-2, axis2=-1).reshape(-1, 1, 1)
    cov = cov / tra
    eye = jnp.eye(cov.shape[-1], dtype=cov.dtype)[None]
    return cov + 1e-5 * eye


if __name__ == "__main__":
    key = jax.random.PRNGKey(0)
    k1, k2 = jax.random.split(key)

    # Case 1: full-T path, f32 input with the PyTorch-style trailing singleton.
    B, C, T = 4, 16, 64
    x1 = jax.random.normal(k1, (B, C, T, 1), dtype=jnp.float32)
    out1 = signal2spd(x1)
    jax.block_until_ready(out1)
    ref1 = _reference(x1)
    assert out1.shape == (B, C, C)
    assert jnp.allclose(out1, ref1, atol=1e-5, rtol=1e-5), float(
        jnp.max(jnp.abs(out1 - ref1)))

    # Case 2: T-accumulation path (forced 128-lane T blocks), bf16 input kept
    # in native dtype through the DMA and upcast inside the kernel.
    B2, C2, T2 = 2, 16, 256
    x2 = jax.random.normal(k2, (B2, C2, T2), dtype=jnp.bfloat16)
    out2 = signal2spd(x2, t_block=128)
    jax.block_until_ready(out2)
    ref2 = _reference(x2)
    assert out2.shape == (B2, C2, C2)
    assert jnp.allclose(out2, ref2, atol=5e-5, rtol=1e-4), float(
        jnp.max(jnp.abs(out2 - ref2)))

    print("KERNEL_OK")
</pallas_src>

<mosaic_0001>
module attributes {stable_mosaic.version = 11 : i64} {
  func.func @_signal2spd_kernel_full(%arg0: i32, %arg1: memref<1x16x64xf32, #tpu.memory_space<vmem>>, %arg2: memref<1x16x16xf32, #tpu.memory_space<vmem>>) attributes {dimension_semantics = [#tpu.dimension_semantics<parallel>], iteration_bounds = array<i64: 4>, scalar_prefetch = 0 : i64, scratch_operands = 0 : i64, tpu.core_type = #tpu.core_type<tc>, window_params = [{transform_indices = @transform_0, window_bounds = array<i64: 1, 16, 64>}, {transform_indices = @transform_1, window_bounds = array<i64: 1, 16, 16>}]} {
    %c0 = arith.constant 0 : index
    %c0_0 = arith.constant 0 : index
    %c0_1 = arith.constant 0 : index
    %0 = vector.load %arg1[%c0, %c0_0, %c0_1] : memref<1x16x64xf32, #tpu.memory_space<vmem>>, vector<1x16x64xf32>
    %cst = arith.constant dense<0.000000e+00> : vector<1x16xf32>
    %1 = vector.multi_reduction <add>, %0, %cst [2] : vector<1x16x64xf32> to vector<1x16xf32>
    %2 = vector.shape_cast %1 : vector<1x16xf32> to vector<1x16x1xf32>
    %cst_2 = arith.constant 6.400000e+01 : f32
    %3 = vector.broadcast %cst_2 : f32 to vector<1x16x1xf32>
    %4 = arith.divf %2, %3 : vector<1x16x1xf32>
    %5 = vector.broadcast %4 : vector<1x16x1xf32> to vector<1x16x64xf32>
    %6 = arith.subf %0, %5 : vector<1x16x64xf32>
    "tpu.trace_start"() <{level = 10 : i32, message = "bct,bdt->bcd"}> : () -> ()
    %cst_3 = arith.constant dense<0.000000e+00> : vector<1x16x16xf32>
    %7 = tpu.matmul %6, %6, %cst_3 {dimension_numbers = #tpu.dot_dimension_numbers<[2], [2], [1], [1], [0, 0, 0, 1, 1, 1], [0], [0]>} : vector<1x16x64xf32>, vector<1x16x64xf32>, vector<1x16x16xf32> -> vector<1x16x16xf32>
    "tpu.trace_stop"() : () -> ()
    %8 = arith.mulf %6, %6 : vector<1x16x64xf32>
    %cst_4 = arith.constant dense<0.000000e+00> : vector<1x16xf32>
    %9 = vector.multi_reduction <add>, %8, %cst_4 [2] : vector<1x16x64xf32> to vector<1x16xf32>
    %10 = vector.shape_cast %9 : vector<1x16xf32> to vector<1x16x1xf32>
    %cst_5 = arith.constant dense<0.000000e+00> : vector<1x1xf32>
    %11 = vector.multi_reduction <add>, %10, %cst_5 [1] : vector<1x16x1xf32> to vector<1x1xf32>
    %12 = vector.shape_cast %11 : vector<1x1xf32> to vector<1x1x1xf32>
    %13 = tpu.reciprocal %12 : vector<1x1x1xf32> -> vector<1x1x1xf32>
    %14 = tpu.iota {dimensions = array<i32: 0>} : vector<16x16xi32>
    %15 = tpu.iota {dimensions = array<i32: 1>} : vector<16x16xi32>
    %16 = arith.cmpi eq, %14, %15 : vector<16x16xi32>
    %17 = arith.extui %16 : vector<16x16xi1> to vector<16x16xi32>
    %18 = arith.sitofp %17 : vector<16x16xi32> to vector<16x16xf32>
    %19 = vector.broadcast %13 : vector<1x1x1xf32> to vector<1x16x16xf32>
    %20 = arith.mulf %7, %19 : vector<1x16x16xf32>
    %21 = vector.shape_cast %18 : vector<16x16xf32> to vector<1x16x16xf32>
    %cst_6 = arith.constant 9.99999974E-6 : f32
    %22 = vector.broadcast %cst_6 : f32 to vector<1x16x16xf32>
    %23 = arith.mulf %22, %21 : vector<1x16x16xf32>
    %24 = arith.addf %20, %23 : vector<1x16x16xf32>
    %c0_7 = arith.constant 0 : index
    %c0_8 = arith.constant 0 : index
    %c0_9 = arith.constant 0 : index
    %25 = vector.load %arg2[%c0_7, %c0_8, %c0_9] : memref<1x16x16xf32, #tpu.memory_space<vmem>>, vector<1x16x16xf32>
    tpu.vector_store %arg2[%c0_7, %c0_8, %c0_9], %24 {strides = array<i32>} : memref<1x16x16xf32, #tpu.memory_space<vmem>>, vector<1x16x16xf32>,
    return
  }
  func.func @transform_0(%arg0: i32) -> (i32, i32, i32) {
    %c0_i32 = arith.constant 0 : i32
    %c0_i32_0 = arith.constant 0 : i32
    %c0_i32_1 = arith.constant 0 : i32
    return %arg0, %c0_i32, %c0_i32_0 : i32, i32, i32
  }
  func.func @transform_1(%arg0: i32) -> (i32, i32, i32) {
    %c0_i32 = arith.constant 0 : i32
    %c0_i32_0 = arith.constant 0 : i32
    %c0_i32_1 = arith.constant 0 : i32
    return %arg0, %c0_i32, %c0_i32_0 : i32, i32, i32
  }
}

</mosaic_0001>

<llo_original>
// kernel: tpu_custom_call.1
$region0: #{tpu_custom_call.1}
  #allocation0 [shape = 'u32[]', space=smem, size = 0x4, offset = 0x4, fixed_abs, tag = 'smem constant byte address 0x4 - core index']
  #allocation1 [shape = 'u32[144,128]{1,0:T(1,128)}', space=vmem, size = 0x12000, scoped, tag = 'internal scratch']
  %s0 = inlined_call_operand.hbm [shape: f32[4,16,64], index: 0, kind: input, shape index: {}]
  %s1 = inlined_call_operand.hbm [shape: f32[4,16,16], index: 1, kind: output, shape index: {}]
  %s2 = sld [smem:[#allocation0]]
  $region41: #{tpu_custom_call.1} parent=0
    _
  %s4 = ssub.s32 1, %s2
  %s5 = scalar_select 0, %s4, %s2
  $region1: #{tpu_custom_call.1} parent=0
    #allocation2 [shape = 'u8[16384]{0}', space=vmem, size = 0x4000, scoped, tag = 'input window, operand 0']
    #allocation3 [shape = 's32[2]{0}', space=sflag, size = 0x8, scoped, tag = 'scoped memory for tpu_custom_call.1']
    #allocation4 [shape = 's32[2]{0}', space=sflag, size = 0x8, scoped, tag = 'scoped memory for tpu_custom_call.1']
    #allocation5 [shape = 'u8[16384]{0}', space=vmem, size = 0x4000, scoped, tag = 'output window, operand 0']
    %6 = vsyncpa [#allocation3], 0
    %s7 = scalar_lea.sflag [#allocation3], 1
    %8 = vsyncpa %s7, 0
    %9 = vsyncpa [#allocation4], 0
    %s10 = scalar_lea.sflag [#allocation4], 1
    %11 = vsyncpa %s10, 0
    loop: start=0, step=1, limit=6
    $region2: #{tpu_custom_call.1} parent=1 // loop_pre_header
      _
    $region3: #{tpu_custom_call.1} parent=1 // loop_header
      %s13 = sphi 0, %s17
      %p14 = scmp.ge.s32.totalorder %s13, 6
      %s23 = sphi 0, %s25
      %s26 = sphi 0, %s23
      %s27 = sphi 0, %s26
      %s43 = sphi 0, %s27
      %s49 = sphi 0, %s51
      %s52 = sphi 0, %s49
      %s53 = sphi 0, %s52
      %s69 = sphi 0, %s53
    $region4: #{tpu_custom_call.1} parent=1 // loop_header_branch
      %16 = sbr.rel (%p14) target = $region8
    $region5: #{tpu_custom_call.1} parent=1 // loop_body
      %s18 = ssub.s32 %s13, 1
      %s19 = ssub.s32 %s13, 2
      %s20 = sadd.s32 %s13, 1
      %s21 = ssub.s32 %s13, %s20
      %p22 = scmp.eq.s32.totalorder %s21, 0
      %s24 = sadd.s32 %s23, 1
      %s25 = scalar_select %p22, %s23, %s24
      %p28 = pneg %p22
      %p29 = scmp.eq.s32.totalorder %s13, 3
      %p30 = por %p28, %p29
      %p31 = scmp.ne.s32.totalorder %s23, %s26
      %p32 = scmp.eq.s32.totalorder %s13, 0
      %p33 = por %p31, %p32
      %p34 = scmp.ne.s32.totalorder %s23, %s26
      %p35 = scmp.eq.s32.totalorder %s18, 3
      %p36 = por %p34, %p35
      %p37 = scmp.ne.s32.totalorder %s26, %s27
      %p38 = scmp.eq.s32.totalorder %s18, 0
      %p39 = por %p37, %p38
      %p40 = scmp.ne.s32.totalorder %s26, %s27
      %p41 = scmp.eq.s32.totalorder %s19, 3
      %p42 = por %p40, %p41
      %p44 = scmp.ne.s32.totalorder %s27, %s43
      %p45 = scmp.eq.s32.totalorder %s19, 0
      %p46 = por %p44, %p45
      %s47 = ssub.s32 %s13, %s20
      %p48 = scmp.eq.s32.totalorder %s47, 0
      %s50 = sadd.s32 %s49, 1
      %s51 = scalar_select %p48, %s49, %s50
      %p54 = pneg %p48
      %p55 = scmp.eq.s32.totalorder %s13, 3
      %p56 = por %p54, %p55
      %p57 = scmp.ne.s32.totalorder %s49, %s52
      %p58 = scmp.eq.s32.totalorder %s13, 0
      %p59 = por %p57, %p58
      %p60 = scmp.ne.s32.totalorder %s49, %s52
      %p61 = scmp.eq.s32.totalorder %s18, 3
      %p62 = por %p60, %p61
      %p63 = scmp.ne.s32.totalorder %s52, %s53
      %p64 = scmp.eq.s32.totalorder %s18, 0
      %p65 = por %p63, %p64
      %p66 = scmp.ne.s32.totalorder %s52, %s53
      %p67 = scmp.eq.s32.totalorder %s19, 3
      %p68 = por %p66, %p67
      %p70 = scmp.ne.s32.totalorder %s53, %s69
      %p71 = scmp.eq.s32.totalorder %s19, 0
      %p72 = por %p70, %p71
      %p73 = scmp.le.s32.totalorder 1, %s13
      %p74 = scmp.lt.s32.totalorder %s13, 5
      %p75 = pnand %p73, %p74
      %p76 = pneg %p75
      // Predicated region
      $region9: #{tpu_custom_call.1} parent=5 // pred_check
        _
      $region10: #{tpu_custom_call.1} parent=5 // pred_check_branch
        %78 = sbr.rel (%p75) target = $region12
      $region11: #{tpu_custom_call.1} parent=5 // pred_region
        %s79 = ssub.s32 %s13, 1
      $region12: #{tpu_custom_call.1} parent=5 // pred_fallthru
        _
      %p80 = scmp.lt.s32.totalorder %s13, 4
      // Predicated region
      $region13: #{tpu_custom_call.1} parent=5 // pred_check
        %p81 = pneg %p80
      $region14: #{tpu_custom_call.1} parent=5 // pred_check_branch
        %83 = sbr.rel (%p81) target = $region16
      $region15: #{tpu_custom_call.1} parent=5 // pred_region
        // Predicated region
        $region17: #{tpu_custom_call.1} parent=15 // pred_check
          %p84 = pneg %p33
        $region18: #{tpu_custom_call.1} parent=15 // pred_check_branch
          %86 = sbr.rel (%p84) target = $region20
        $region19: #{tpu_custom_call.1} parent=15 // pred_region
          %s87 = sand.u32 %s23, 1
          %s88 = scalar_lea.sflag [#allocation3], %s87
          %s89 = sand.u32 %s23, 1
          %s90 = smul.addr %s89, 16
          %s91 = scalar_lea.vmem [#allocation2], %s90
          %s93 = ssub.s32 256, 256
          %94 = vsyncadd %s88, %s93
          %s95 = smul.addr %s13, 2
          %s96 = smul.addr %s95, 128
          %s97 = scalar_lea.hbm %s0, %s96
          %s98 = sshll.u32 %s91, 4
          %s99 = int_to_ptr.vmem [resolvable:$true] %s98
          %104 = dma.hbm_to_vmem [thread:$0]  %s97, 256, %s99, %s88, 128, 128, 8
        $region20: #{tpu_custom_call.1} parent=15 // pred_fallthru
          _
      $region16: #{tpu_custom_call.1} parent=5 // pred_fallthru
        _
      %p105 = scmp.le.s32.totalorder 1, %s13
      %p106 = scmp.lt.s32.totalorder %s13, 5
      %p107 = pnand %p105, %p106
      %p108 = pneg %p107
      // Predicated region
      $region21: #{tpu_custom_call.1} parent=5 // pred_check
        _
      $region22: #{tpu_custom_call.1} parent=5 // pred_check_branch
        %110 = sbr.rel (%p107) target = $region24
      $region23: #{tpu_custom_call.1} parent=5 // pred_region
        %s111 = ssub.s32 %s13, 1
        %s112 = sand.u32 %s26, 1
        %s113 = scalar_lea.sflag [#allocation3], %s112
        %s114 = sand.u32 %s26, 1
        %s115 = smul.addr %s114, 16
        %s116 = scalar_lea.vmem [#allocation2], %s115
        // Predicated region
        $region25: #{tpu_custom_call.1} parent=23 // pred_check
          %p117 = pneg %p39
        $region26: #{tpu_custom_call.1} parent=23 // pred_check_branch
          %119 = sbr.rel (%p117) target = $region28
        $region27: #{tpu_custom_call.1} parent=23 // pred_region
          %120 = dma.done %s113, 256
        $region28: #{tpu_custom_call.1} parent=23 // pred_fallthru
          _
        %s121 = sand.u32 %s26, 1
        %s122 = scalar_lea.sflag [#allocation3], %s121
        %s123 = sand.u32 %s26, 1
        %s124 = smul.addr %s123, 16
        %s125 = scalar_lea.vmem [#allocation2], %s124
        %p126 = pneg %p39
        %p127 = pneg %p36
        %p128 = pneg %p65
        %p129 = pneg %p62
        %s130 = sand.u32 %s52, 1
        %s131 = scalar_lea.sflag [#allocation4], %s130
        %s132 = sand.u32 %s52, 1
        %s133 = smul.addr %s132, 16
        %s134 = scalar_lea.vmem [#allocation5], %s133
        %v135 = vld [vmem:[%s116] sm:$0xff]
        %v136 = vld [vmem:[%s116 + $0x8] sm:$0xff]
        %vm137 = vcmask 523264
        %v138 = vsel %vm137, %v135, 0.0
        %139 = vadd.xlane.f32.xlu0 %v138
        %v140 = vpop.xlane.xlu0 %139
        %v141 = vsel %vm137, %v136, 0.0
        %142 = vadd.xlane.f32.xlu0 %v141
        %v143 = vpop.xlane.xlu0 %142
        %v144 = vrcp.pop 64.0
        %v145 = vmul.f32 %v140, %v144
        %v146 = vmul.f32 %v143, %v144
        %v147 = vsub.f32 %v135, %v145
        %v148 = vsub.f32 %v136, %v146
        %v150 = vsel %vm137, %v147, 0
        %v153 = vsel %vm137, %v148, 0
        %155 = vmatprep.subr.mxu0 0.0
        %156 = vmatpush1.xpose.msra.mxu0 0.0
        %157 = vmatprep.subr.mxu0 0.0
        %158 = vmatpush1.xpose.msra.mxu0 0.0
        %159 = vmatprep.subr.mxu0 0.0
        %160 = vmatpush1.xpose.msra.mxu0 0.0
        %161 = vmatprep.subr.mxu0 0.0
        %162 = vmatpush1.xpose.msra.mxu0 0.0
        %163 = vmatprep.subr.mxu0 0.0
        %164 = vmatpush1.xpose.msra.mxu0 0.0
        %165 = vmatprep.subr.mxu0 0.0
        %166 = vmatpush1.xpose.msra.mxu0 0.0
        %167 = vmatprep.subr.mxu0 0.0
        %168 = vmatpush1.xpose.msra.mxu0 0.0
        %169 = vmatprep.subr.mxu0 0.0
        %170 = vmatpush1.xpose.msra.mxu0 0.0
        %171 = vmatprep.subr.mxu0 0.0
        %172 = vmatpush1.xpose.msra.mxu0 0.0
        %173 = vmatprep.subr.mxu0 0.0
        %174 = vmatpush1.xpose.msra.mxu0 0.0
        %175 = vmatprep.subr.mxu0 0.0
        %176 = vmatpush1.xpose.msra.mxu0 0.0
        %177 = vmatprep.subr.mxu0 0.0
        %178 = vmatpush1.xpose.msra.mxu0 0.0
        %179 = vmatprep.subr.mxu0 0.0
        %180 = vmatpush1.xpose.msra.mxu0 0.0
        %181 = vmatprep.subr.mxu0 0.0
        %182 = vmatpush1.xpose.msra.mxu0 0.0
        %183 = vmatprep.subr.mxu0 0.0
        %184 = vmatpush1.xpose.msra.mxu0 %v153
        %185 = vmatprep.subr.mxu0 0.0
        %186 = vmatpush1.xpose.msra.mxu0 %v150
        %187 = vmatprep.subr.mxu0 0.0
        %188 = vmatpush2.xpose.msra.mxu0 0.0
        %189 = vmatprep.subr.mxu0 0.0
        %190 = vmatpush2.xpose.msra.mxu0 0.0
        %191 = vmatprep.subr.mxu0 0.0
        %192 = vmatpush2.xpose.msra.mxu0 0.0
        %193 = vmatprep.subr.mxu0 0.0
        %194 = vmatpush2.xpose.msra.mxu0 0.0
        %195 = vmatprep.subr.mxu0 0.0
        %196 = vmatpush2.xpose.msra.mxu0 0.0
        %197 = vmatprep.subr.mxu0 0.0
        %198 = vmatpush2.xpose.msra.mxu0 0.0
        %199 = vmatprep.subr.mxu0 0.0
        %200 = vmatpush2.xpose.msra.mxu0 0.0
        %201 = vmatprep.subr.mxu0 0.0
        %202 = vmatpush2.xpose.msra.mxu0 0.0
        %203 = vmatprep.subr.mxu0 0.0
        %204 = vmatpush2.xpose.msra.mxu0 0.0
        %205 = vmatprep.subr.mxu0 0.0
        %206 = vmatpush2.xpose.msra.mxu0 0.0
        %207 = vmatprep.subr.mxu0 0.0
        %208 = vmatpush2.xpose.msra.mxu0 0.0
        %209 = vmatprep.subr.mxu0 0.0
        %210 = vmatpush2.xpose.msra.mxu0 0.0
        %211 = vmatprep.subr.mxu0 0.0
        %212 = vmatpush2.xpose.msra.mxu0 0.0
        %213 = vmatprep.subr.mxu0 0.0
        %214 = vmatpush2.xpose.msra.mxu0 0.0
        %215 = vmatprep.subr.mxu0 0.0
        %216 = vmatpush2.xpose.msra.mxu0 0.0
        %217 = vmatprep.subr.mxu0 0.0
        %218 = vmatpush2.xpose.msra.mxu0 0.0
        %219 = vmatprep.mubr.f32.mxu0 0.0
        %220 = vmatmul.mubr.f32.gmra.mxu0 %v150
        %v221 = vpop.f32.mrf.mxu0
        %v222 = vadd.f32 0.0, %v221
        %v223 = vpop.f32.mrf.mxu0
        %224 = vmatprep.mubr.f32.mxu0 0.0
        %225 = vmatmul.mubr.f32.gmra.mxu0 %v153
        %v226 = vpop.f32.mrf.mxu0
        %v227 = vadd.f32 0.0, %v226
        %v228 = vpop.f32.mrf.mxu0
        %229 = vdwg.mxu0
        %v230 = vmul.f32 %v147, %v147
        %v231 = vmul.f32 %v148, %v148
        %v232 = vsel %vm137, %v230, 0.0
        %233 = vadd.xlane.f32.xlu0 %v232
        %v234 = vpop.xlane.xlu0 %233
        %v235 = vsel %vm137, %v231, 0.0
        %236 = vadd.xlane.f32.xlu0 %v235
        %v237 = vpop.xlane.xlu0 %236
        %v238 = vadd.f32 %v234, %v237
        %v239 = vrot.slane %v238, 4
        %v240 = vadd.f32 %v238, %v239
        %v241 = vrot.slane %v240, 2
        %v242 = vadd.f32 %v240, %v241
        %v243 = vrot.slane %v242, 1
        %v244 = vadd.f32 %v242, %v243
        %v245 = vrcp.pop %v244
        %v246 = vlaneseq
        %v247 = vshrl.u32 %v246, 7
        %v248 = vadd.s32 %v247, 8
        %v249 = vlaneseq
        %v250 = vand.u32 %v249, 127
        %vm251 = vcmp.eq.s32.totalorder %v247, %v250
        %vm252 = vcmp.eq.s32.totalorder %v248, %v250
        %v253 = vsel %vm251, 1, 0
        %v254 = vsel %vm252, 1, 0
        %v255 = vcvt.s32.f32 %v253
        %v256 = vcvt.s32.f32 %v254
        %v257 = vmul.f32 %v222, %v245
        %v258 = vmul.f32 %v227, %v245
        %v259 = vmul.f32 %v255, 1e-05
        %v260 = vmul.f32 %v256, 1e-05
        %v261 = vadd.f32 %v257, %v259
        %v262 = vadd.f32 %v258, %v260
        %vm263 = vcmask 130048
        %264 = vst.msk [vmem:[%s134] sm:$0xff] %vm263, %v261
        %265 = vst.msk [vmem:[%s134 + $0x8] sm:$0xff] %vm263, %v262
        %s266 = sand.u32 %s52, 1
        %s267 = scalar_lea.sflag [#allocation4], %s266
        %s268 = sand.u32 %s52, 1
        %s269 = smul.addr %s268, 16
        %s270 = scalar_lea.vmem [#allocation5], %s269
        // Predicated region
        $region29: #{tpu_custom_call.1} parent=23 // pred_check
          %p271 = pneg %p62
        $region30: #{tpu_custom_call.1} parent=23 // pred_check_branch
          %273 = sbr.rel (%p271) target = $region32
        $region31: #{tpu_custom_call.1} parent=23 // pred_region
          %s275 = ssub.s32 256, 256
          %276 = vsyncadd %s267, %s275
          %s277 = smul.addr %s18, 2
          %s278 = smul.addr %s277, 128
          %s279 = scalar_lea.hbm %s1, %s278
          %s280 = sshll.u32 %s270, 4
          %s281 = int_to_ptr.vmem [resolvable:$true] %s280
          %286 = dma.vmem_to_hbm [thread:$0]  %s281, 256, %s279, %s267, 128, 128, 8
        $region32: #{tpu_custom_call.1} parent=23 // pred_fallthru
          _
      $region24: #{tpu_custom_call.1} parent=5 // pred_fallthru
        _
      %p287 = scmp.le.s32.totalorder 2, %s13
      // Predicated region
      $region33: #{tpu_custom_call.1} parent=5 // pred_check
        %p288 = pneg %p287
      $region34: #{tpu_custom_call.1} parent=5 // pred_check_branch
        %290 = sbr.rel (%p288) target = $region36
      $region35: #{tpu_custom_call.1} parent=5 // pred_region
        %s291 = ssub.s32 %s13, 2
        // Predicated region
        $region37: #{tpu_custom_call.1} parent=35 // pred_check
          %p292 = pneg %p68
        $region38: #{tpu_custom_call.1} parent=35 // pred_check_branch
          %294 = sbr.rel (%p292) target = $region40
        $region39: #{tpu_custom_call.1} parent=35 // pred_region
          %s295 = sand.u32 %s53, 1
          %s296 = scalar_lea.sflag [#allocation4], %s295
          %s297 = sand.u32 %s53, 1
          %s298 = smul.addr %s297, 16
          %s299 = scalar_lea.vmem [#allocation5], %s298
          %300 = dma.done %s296, 256
        $region40: #{tpu_custom_call.1} parent=35 // pred_fallthru
          _
      $region36: #{tpu_custom_call.1} parent=5 // pred_fallthru
        _
    $region6: #{tpu_custom_call.1} parent=1 // loop_footer
      %s17 = sadd.s32 1, %s13
    $region7: #{tpu_custom_call.1} parent=1 // loop_footer_branch
      %12 = sbr.rel target = $region3
    $region8: #{tpu_custom_call.1} parent=1 // loop_exit
      _
    %301 = vsyncpa [#allocation3], 1
    %s302 = scalar_lea.sflag [#allocation3], 1
    %303 = vsyncpa %s302, 1
    %304 = vsyncpa [#allocation4], 1
    %s305 = scalar_lea.sflag [#allocation4], 1
    %306 = vsyncpa %s305, 1

</llo_original>
